<compile_context>
chip_gen: v7x
topology: tpu7x:2x2x1
jax: 0.10.0
libtpu: 0.0.40
codegen_flags: <defaults>
</compile_context>

<pallas_src>
import jax
import jax.numpy as jnp
from jax.experimental import pallas as pl
from jax.experimental.pallas import tpu as pltpu


def _add_bias_kernel(x_ref, b_ref, o_ref):
    # Elementwise broadcasted add on the VPU: the bias block is (tile_r, 1) or
    # (1, tile_c) and broadcasts against the (tile_r, tile_c) x block.
    o_ref[...] = x_ref[...] + b_ref[...]


def _pick_tile(dim, pref, align):
    """Largest multiple of `align` that divides `dim` and is <= `pref`;
    falls back to the full dim (always a legal block shape)."""
    if dim % align == 0:
        t = min(pref, dim)
        t -= t % align
        while t >= align and dim % t:
            t -= align
        if t >= align:
            return t
    return dim


def _pick_row_tile(n, c, pref=512):
    """Row tile for the flattened (N*C, H*W) layout.

    Must be a multiple of C (so the per-row channel pattern is identical in
    every block -> the bias block can be grid-invariant) and divide N*C.
    Prefer a multiple of 8 (f32 sublane pack) no larger than `pref`; fall
    back to the full row extent.
    """
    best = None
    for k in range(1, n + 1):
        if n % k == 0:
            t = k * c
            if t % 8 == 0 and t <= pref:
                best = t  # keep the largest valid candidate
    return best if best is not None else n * c


def add_bias(x, bias):
    """Forward pass of AddBias.

    bias: (C, 1) array — mirrors nn.Parameter(bias.unsqueeze(1)).
    x:    (N, C) or (N, C, H, W) (NCHW).
    """
    C = bias.shape[0]
    bias_vec = bias.reshape(C).astype(x.dtype)
    itemsize = jnp.dtype(x.dtype).itemsize

    if x.ndim == 2:
        N, Cx = x.shape
        assert Cx == C, "channel mismatch"
        tile_n = _pick_tile(N, 512, 8)
        tile_c = _pick_tile(C, 1024, 128)
        b_row = bias_vec.reshape(1, C)  # bias.t().view(1, -1)
        grid = (N // tile_n, C // tile_c)
        cost = pl.CostEstimate(
            flops=N * C,
            transcendentals=0,
            bytes_accessed=2 * N * C * itemsize + C * itemsize,
        )
        # TODO(synk): for very small C with huge N, a lane-dense (C, N)
        # layout would avoid masked stores, but the wrapper transpose would
        # cost two extra HBM passes, so we keep the natural (N, C) layout.
        return pl.pallas_call(
            _add_bias_kernel,
            out_shape=jax.ShapeDtypeStruct((N, C), x.dtype),
            grid=grid,
            in_specs=[
                pl.BlockSpec((tile_n, tile_c), lambda i, j: (i, j)),
                pl.BlockSpec((1, tile_c), lambda i, j: (0, j)),
            ],
            out_specs=pl.BlockSpec((tile_n, tile_c), lambda i, j: (i, j)),
            compiler_params=pltpu.CompilerParams(
                dimension_semantics=("parallel", "parallel")),
            cost_estimate=cost,
        )(x, b_row)

    elif x.ndim == 4:
        N, Cx, H, W = x.shape
        assert Cx == C, "channel mismatch"
        rows, cols = N * C, H * W
        # Flatten NCHW -> (N*C, H*W); row r corresponds to channel r % C.
        x2 = x.reshape(rows, cols)
        tile_r = _pick_row_tile(N, C, pref=512)
        tile_c = _pick_tile(cols, 1024, 128)
        # Small (tile_r, 1) bias column; the constant index_map keeps it
        # resident in VMEM across the whole grid (never re-streamed).
        b_col = jnp.tile(bias_vec, tile_r // C).reshape(tile_r, 1)
        grid = (rows // tile_r, cols // tile_c)
        cost = pl.CostEstimate(
            flops=rows * cols,
            transcendentals=0,
            bytes_accessed=2 * rows * cols * itemsize + tile_r * itemsize,
        )
        out2 = pl.pallas_call(
            _add_bias_kernel,
            out_shape=jax.ShapeDtypeStruct((rows, cols), x.dtype),
            grid=grid,
            in_specs=[
                pl.BlockSpec((tile_r, tile_c), lambda i, j: (i, j)),
                pl.BlockSpec((tile_r, 1), lambda i, j: (0, 0)),
            ],
            out_specs=pl.BlockSpec((tile_r, tile_c), lambda i, j: (i, j)),
            compiler_params=pltpu.CompilerParams(
                dimension_semantics=("parallel", "parallel")),
            cost_estimate=cost,
        )(x2, b_col)
        return out2.reshape(N, C, H, W)

    else:
        raise ValueError(f"AddBias expects 2-D or 4-D input, got ndim={x.ndim}")


if __name__ == "__main__":
    key = jax.random.PRNGKey(0)
    k_bias, k_x4, k_x2 = jax.random.split(key, 3)

    C = 4
    # Deterministic parameter init: bias vector (C,), then unsqueeze(1).
    bias_vec = jax.random.normal(k_bias, (C,), dtype=jnp.float32)
    bias_param = bias_vec.reshape(C, 1)  # nn.Parameter(bias.unsqueeze(1))

    # 4-D path: NCHW input (batch=2, channels=4, spatial=16x16).
    x4 = jax.random.normal(k_x4, (2, C, 16, 16), dtype=jnp.float32)
    out4 = jax.block_until_ready(add_bias(x4, bias_param))
    ref4 = x4 + bias_vec.reshape(1, C, 1, 1)
    assert out4.shape == x4.shape and out4.dtype == x4.dtype
    assert jnp.allclose(out4, ref4, atol=1e-6, rtol=1e-6)

    # 2-D path: (batch=2, features=4).
    x2 = jax.random.normal(k_x2, (2, C), dtype=jnp.float32)
    out2 = jax.block_until_ready(add_bias(x2, bias_param))
    ref2 = x2 + bias_vec.reshape(1, C)
    assert out2.shape == x2.shape and out2.dtype == x2.dtype
    assert jnp.allclose(out2, ref2, atol=1e-6, rtol=1e-6)

    print("KERNEL_OK")
</pallas_src>

<mosaic_0001>
module attributes {stable_mosaic.version = 11 : i64} {
  func.func @_add_bias_kernel(%arg0: i32, %arg1: i32, %arg2: memref<8x256xf32, #tpu.memory_space<vmem>>, %arg3: memref<8x1xf32, #tpu.memory_space<vmem>>, %arg4: memref<8x256xf32, #tpu.memory_space<vmem>>) attributes {dimension_semantics = [#tpu.dimension_semantics<parallel>, #tpu.dimension_semantics<parallel>], iteration_bounds = array<i64: 1, 1>, scalar_prefetch = 0 : i64, scratch_operands = 0 : i64, tpu.core_type = #tpu.core_type<tc>, window_params = [{transform_indices = @transform_0, window_bounds = array<i64: 8, 256>}, {pipeline_mode = #tpu.pipeline_mode<synchronous>, transform_indices = @transform_1, window_bounds = array<i64: 8, 1>}, {transform_indices = @transform_2, window_bounds = array<i64: 8, 256>}]} {
    %c0 = arith.constant 0 : index
    %c0_0 = arith.constant 0 : index
    %0 = vector.load %arg2[%c0, %c0_0] : memref<8x256xf32, #tpu.memory_space<vmem>>, vector<8x256xf32>
    %c0_1 = arith.constant 0 : index
    %c0_2 = arith.constant 0 : index
    %1 = vector.load %arg3[%c0_1, %c0_2] : memref<8x1xf32, #tpu.memory_space<vmem>>, vector<8x1xf32>
    %2 = vector.broadcast %1 : vector<8x1xf32> to vector<8x256xf32>
    %3 = arith.addf %0, %2 : vector<8x256xf32>
    %c0_3 = arith.constant 0 : index
    %c0_4 = arith.constant 0 : index
    %4 = vector.load %arg4[%c0_3, %c0_4] : memref<8x256xf32, #tpu.memory_space<vmem>>, vector<8x256xf32>
    tpu.vector_store %arg4[%c0_3, %c0_4], %3 {strides = array<i32>} : memref<8x256xf32, #tpu.memory_space<vmem>>, vector<8x256xf32>,
    return
  }
  func.func @transform_0(%arg0: i32, %arg1: i32) -> (i32, i32) {
    %c0_i32 = arith.constant 0 : i32
    return %arg0, %arg1 : i32, i32
  }
  func.func @transform_1(%arg0: i32, %arg1: i32) -> (i32, i32) {
    %c0_i32 = arith.constant 0 : i32
    %c0_i32_0 = arith.constant 0 : i32
    %c0_i32_1 = arith.constant 0 : i32
    return %c0_i32, %c0_i32_0 : i32, i32
  }
  func.func @transform_2(%arg0: i32, %arg1: i32) -> (i32, i32) {
    %c0_i32 = arith.constant 0 : i32
    return %arg0, %arg1 : i32, i32
  }
}

</mosaic_0001>

<llo_original>
// kernel: tpu_custom_call.1
$region0: #{tpu_custom_call.1}
  #allocation0 [shape = 'u32[]', space=smem, size = 0x4, offset = 0x4, fixed_abs, tag = 'smem constant byte address 0x4 - core index']
  #allocation1 [shape = 'u32[144,128]{1,0:T(1,128)}', space=vmem, size = 0x12000, scoped, tag = 'internal scratch']
  %s0 = inlined_call_operand.hbm [shape: f32[8,256], index: 0, kind: input, shape index: {}]
  %s1 = inlined_call_operand.vmem [shape: f32[8,1], index: 1, kind: input, shape index: {}]
  %s2 = inlined_call_operand.hbm [shape: f32[8,256], index: 2, kind: output, shape index: {}]
  %s3 = sld [smem:[#allocation0]]
  $region22: #{tpu_custom_call.1} parent=0
    _
  %s5 = ssub.s32 1, %s3
  %s6 = scalar_select 0, %s5, %s3
  $region1: #{tpu_custom_call.1} parent=0
    #allocation2 [shape = 'u8[8192]{0}', space=vmem, size = 0x2000, scoped, tag = 'input window, operand 0, single buffered']
    #allocation3 [shape = 's32[1]{0}', space=sflag, size = 0x4, scoped, tag = 'scoped memory for tpu_custom_call.1']
    #allocation4 [shape = 's32[1]{0}', space=sflag, size = 0x4, scoped, tag = 'scoped memory for tpu_custom_call.1']
    #allocation5 [shape = 'u8[8192]{0}', space=vmem, size = 0x2000, scoped, tag = 'output window, operand 0, single buffered']
    %7 = vsyncpa [#allocation3], 0
    %8 = vsyncpa [#allocation4], 0
    // Predicated region
    $region2: #{tpu_custom_call.1} parent=1 // pred_check
      _
    $region3: #{tpu_custom_call.1} parent=1 // pred_check_branch
      %10 = sbr.rel (0) target = $region5
    $region4: #{tpu_custom_call.1} parent=1 // pred_region
      %s12 = ssub.s32 256, 256
      %13 = vsyncadd [#allocation3], %s12
      %s15 = sshll.u32 [#allocation2], 4
      %s16 = int_to_ptr.vmem [resolvable:$true] %s15
      %18 = dma.hbm_to_vmem [thread:$0]  %s0, 256, %s16, [#allocation3]
    $region5: #{tpu_custom_call.1} parent=1 // pred_fallthru
      _
    // Predicated region
    $region6: #{tpu_custom_call.1} parent=1 // pred_check
      _
    $region7: #{tpu_custom_call.1} parent=1 // pred_check_branch
      %20 = sbr.rel (0) target = $region9
    $region8: #{tpu_custom_call.1} parent=1 // pred_region
      _
    $region9: #{tpu_custom_call.1} parent=1 // pred_fallthru
      _
    // Predicated region
    $region10: #{tpu_custom_call.1} parent=1 // pred_check
      _
    $region11: #{tpu_custom_call.1} parent=1 // pred_check_branch
      %22 = sbr.rel (0) target = $region13
    $region12: #{tpu_custom_call.1} parent=1 // pred_region
      %23 = dma.done [#allocation3], 256
    $region13: #{tpu_custom_call.1} parent=1 // pred_fallthru
      _
    %v24 = vld [vmem:[#allocation2] sm:$0xff]
    %v25 = vld [vmem:[#allocation2 + $0x8] sm:$0xff]
    %v26 = vld [vmem:[%s1] sm:$0xff]
    %28 = vset.pattern.permute.xlu0 0
    %29 = vperm.xlu0 %28, %v26
    %v30 = vpop.permute.xlu0 %29
    %v32 = vadd.f32 %v24, %v30
    %v33 = vadd.f32 %v25, %v30
    %34 = vst [vmem:[#allocation5] sm:$0xff] %v32
    %35 = vst [vmem:[#allocation5 + $0x8] sm:$0xff] %v33
    // Predicated region
    $region14: #{tpu_custom_call.1} parent=1 // pred_check
      _
    $region15: #{tpu_custom_call.1} parent=1 // pred_check_branch
      %37 = sbr.rel (0) target = $region17
    $region16: #{tpu_custom_call.1} parent=1 // pred_region
      %s39 = ssub.s32 256, 256
      %40 = vsyncadd [#allocation4], %s39
      %s42 = sshll.u32 [#allocation5], 4
      %s43 = int_to_ptr.vmem [resolvable:$true] %s42
      %45 = dma.vmem_to_hbm [thread:$0]  %s43, 256, %s2, [#allocation4]
    $region17: #{tpu_custom_call.1} parent=1 // pred_fallthru
      _
    // Predicated region
    $region18: #{tpu_custom_call.1} parent=1 // pred_check
      _
    $region19: #{tpu_custom_call.1} parent=1 // pred_check_branch
      %47 = sbr.rel (0) target = $region21
    $region20: #{tpu_custom_call.1} parent=1 // pred_region
      %48 = dma.done [#allocation4], 256
    $region21: #{tpu_custom_call.1} parent=1 // pred_fallthru
      _
    %49 = vsyncpa [#allocation3], 1
    %50 = vsyncpa [#allocation4], 1

</llo_original>
